<compile_context>
chip_gen: v7x
topology: tpu7x:2x2x1
jax: 0.10.0
libtpu: 0.0.40
codegen_flags: <defaults>
</compile_context>

<pallas_src>
import jax
import jax.numpy as jnp
from jax import lax
from jax.experimental import pallas as pl
from jax.experimental.pallas import tpu as pltpu


BN_EPS = 1e-5
HIDDEN = 256


def _round_up(x, m):
    return (x + m - 1) // m * m


# --------------------------------------------------------------------------
# Prologue kernel: fc1 -> BN1 -> relu -> fc2 -> BN2 -> relu  (single shot)
# --------------------------------------------------------------------------
def _bottleneck_kernel(x_ref,
                       w1_ref, b1_ref, g1_ref, be1_ref,
                       w2_ref, b2_ref, g2_ref, be2_ref,
                       h2_ref):
    # fc1 (bf16 MXU path when weights are bf16; f32 accumulation)
    x = x_ref[...].astype(w1_ref.dtype)
    h = jnp.dot(x, w1_ref[...], preferred_element_type=jnp.float32) + b1_ref[...]

    # BN1 (training-mode batch stats, biased variance) folded into scale/shift
    mu1 = jnp.mean(h, axis=0, keepdims=True)
    var1 = jnp.mean((h - mu1) * (h - mu1), axis=0, keepdims=True)
    scale1 = g1_ref[...] * lax.rsqrt(var1 + BN_EPS)          # rsqrt -> EUP slot
    shift1 = be1_ref[...] - mu1 * scale1
    h = jnp.maximum(h * scale1 + shift1, 0.0)

    # fc2 + BN2 + relu
    h2 = jnp.dot(h.astype(w2_ref.dtype), w2_ref[...],
                 preferred_element_type=jnp.float32) + b2_ref[...]
    mu2 = jnp.mean(h2, axis=0, keepdims=True)
    var2 = jnp.mean((h2 - mu2) * (h2 - mu2), axis=0, keepdims=True)
    scale2 = g2_ref[...] * lax.rsqrt(var2 + BN_EPS)
    shift2 = be2_ref[...] - mu2 * scale2
    h2_ref[...] = jnp.maximum(h2 * scale2 + shift2, 0.0).astype(h2_ref.dtype)


def _bottleneck(encoding, params):
    b, _ = encoding.shape
    act_dtype = params["w3"].dtype                           # keep fc3 dot in w dtype
    return pl.pallas_call(
        _bottleneck_kernel,
        out_shape=jax.ShapeDtypeStruct((b, HIDDEN), act_dtype),
    )(encoding,
      params["w1"], params["b1"], params["g1"], params["be1"],
      params["w2"], params["b2"], params["g2"], params["be2"])


# --------------------------------------------------------------------------
# Streaming fc3 kernel: one lane-dense output-column tile per grid step
# --------------------------------------------------------------------------
def _fc3_kernel(h2_ref, w3_ref, b3_ref, out_ref):
    out = jnp.dot(h2_ref[...], w3_ref[...],
                  preferred_element_type=jnp.float32) + b3_ref[...]
    out_ref[...] = out.astype(out_ref.dtype)


def decoder_forward(encoding, params, num_points, *, max_tile_n=8192):
    """encoding: (B, K) float32 -> restoration: (B, 3, num_points) float32."""
    b, _ = encoding.shape
    out_w = 3 * num_points

    # ---- bottleneck activation (computed ONCE, on the true batch) ----------
    h2 = _bottleneck(encoding, params)

    # Pad batch rows to a sublane multiple -> unmasked output stores.
    # (fc3 is linear, so zero rows just produce extra rows we slice off; BN
    #  statistics were already computed on the true B above.)
    b_pad = _round_up(b, 8)
    if b_pad != b:
        h2 = jnp.pad(h2, ((0, b_pad - b), (0, 0)))

    # ---- lane-dense fc3 tiling (no divisibility requirement on out_w) ------
    max_tile_n = max(128, (max_tile_n // 128) * 128)
    n128 = _round_up(out_w, 128)
    num_tiles = -(-n128 // max_tile_n)                       # cdiv
    tile_n = _round_up(-(-n128 // num_tiles), 128)           # balanced, <= max_tile_n
    n_pad = tile_n * num_tiles

    w3, b3 = params["w3"], params["b3"]
    if n_pad != out_w:                                       # zero-pad -> unmasked vst
        w3 = jnp.pad(w3, ((0, 0), (0, n_pad - out_w)))
        b3 = jnp.pad(b3, ((0, 0), (0, n_pad - out_w)))

    w_bytes = jnp.dtype(w3.dtype).itemsize
    cost = pl.CostEstimate(
        flops=2 * b_pad * HIDDEN * n_pad,
        transcendentals=0,
        bytes_accessed=(b_pad * HIDDEN * w_bytes             # resident h2
                        + (HIDDEN + 1) * n_pad * w_bytes     # streamed w3 + b3
                        + b_pad * n_pad * 4),                # output writeback
    )

    # Deeper buffering on the dominant w3 stream once the grid is long enough.
    if num_tiles >= 3:
        w3_spec = pl.BlockSpec((HIDDEN, tile_n), lambda j: (0, j),
                               pipeline_mode=pl.Buffered(3))
    else:
        w3_spec = pl.BlockSpec((HIDDEN, tile_n), lambda j: (0, j))

    flat = pl.pallas_call(
        _fc3_kernel,
        out_shape=jax.ShapeDtypeStruct((b_pad, n_pad), jnp.float32),
        grid=(num_tiles,),
        in_specs=[
            pl.BlockSpec((b_pad, HIDDEN), lambda j: (0, 0)),  # h2: resident in VMEM
            w3_spec,                                          # w3 column tile (streamed)
            pl.BlockSpec((1, tile_n), lambda j: (0, j)),      # b3 column tile
        ],
        out_specs=pl.BlockSpec((b_pad, tile_n), lambda j: (0, j)),
        compiler_params=pltpu.CompilerParams(
            dimension_semantics=("parallel",),   # lets megacore split column tiles
            vmem_limit_bytes=40 * 1024 * 1024,   # fits v7x's 64 MiB, > v5e scoped default
        ),
        cost_estimate=cost,
    )(h2, w3, b3)

    # Drop batch/lane padding; same memory order as torch .view(b, 3, num_points).
    return flat[:b, :out_w].reshape(b, 3, num_points)


# --------------------------------------------------------------------------
# Parameter init (mimics nn.Linear default init) and pure-JAX reference
# --------------------------------------------------------------------------
def init_decoder_params(key, k, num_points, dtype=jnp.bfloat16):
    """Weights default to bf16 (halves w3 HBM traffic; kernels accumulate in
    f32).  Pass dtype=jnp.float32 for bit-accurate comparison with an f32
    reference.  BatchNorm affine params stay f32."""
    def linear(key, fan_in, fan_out):
        kw, kb = jax.random.split(key)
        bound = 1.0 / jnp.sqrt(jnp.float32(fan_in))
        w = jax.random.uniform(kw, (fan_in, fan_out), jnp.float32, -bound, bound)
        bb = jax.random.uniform(kb, (1, fan_out), jnp.float32, -bound, bound)
        return w.astype(dtype), bb.astype(dtype)

    k1, k2, k3 = jax.random.split(key, 3)
    w1, b1 = linear(k1, k, HIDDEN)
    w2, b2 = linear(k2, HIDDEN, HIDDEN)
    w3, b3 = linear(k3, HIDDEN, num_points * 3)
    ones = jnp.ones((1, HIDDEN), jnp.float32)
    zeros = jnp.zeros((1, HIDDEN), jnp.float32)
    return {
        "w1": w1, "b1": b1, "g1": ones, "be1": zeros,
        "w2": w2, "b2": b2, "g2": ones, "be2": zeros,
        "w3": w3, "b3": b3,
    }


def _reference_forward(encoding, params, num_points):
    """Pure-JAX f32 reference of the PyTorch forward (training-mode BN)."""
    def bn(h, g, be):
        mu = jnp.mean(h, axis=0, keepdims=True)
        var = jnp.mean((h - mu) ** 2, axis=0, keepdims=True)
        return (h - mu) / jnp.sqrt(var + BN_EPS) * g + be

    f32 = lambda a: a.astype(jnp.float32)
    h = jax.nn.relu(bn(encoding @ f32(params["w1"]) + f32(params["b1"]),
                       params["g1"], params["be1"]))
    h = jax.nn.relu(bn(h @ f32(params["w2"]) + f32(params["b2"]),
                       params["g2"], params["be2"]))
    out = h @ f32(params["w3"]) + f32(params["b3"])
    return out.reshape(encoding.shape[0], 3, num_points)


if __name__ == "__main__":
    K = 32            # encoding dim k
    NUM_POINTS = 64   # num_points  (fc3 width 192 -> padded to lane-dense 256)
    B = 8             # batch (multiple of 8 = f32 sublane)

    key = jax.random.PRNGKey(0)
    k_params, k_x = jax.random.split(key)
    encoding = jax.random.normal(k_x, (B, K), jnp.float32)

    ref = None

    # 1) f32 weights, small tile (forces a 2-step streamed grid): tight check.
    params_f32 = init_decoder_params(k_params, K, NUM_POINTS, dtype=jnp.float32)
    out_f32 = decoder_forward(encoding, params_f32, NUM_POINTS, max_tile_n=128)
    out_f32 = jax.block_until_ready(out_f32)
    assert out_f32.shape == (B, 3, NUM_POINTS), out_f32.shape
    ref = _reference_forward(encoding, params_f32, NUM_POINTS)
    assert jnp.allclose(out_f32, ref, atol=1e-4, rtol=1e-4)

    # 2) bf16 weights (production default, halves w3 HBM bytes): loose check.
    params_bf16 = init_decoder_params(k_params, K, NUM_POINTS)       # bf16 default
    out_bf16 = decoder_forward(encoding, params_bf16, NUM_POINTS)    # default big tiles
    out_bf16 = jax.block_until_ready(out_bf16)
    assert out_bf16.shape == (B, 3, NUM_POINTS), out_bf16.shape
    assert jnp.allclose(out_bf16, ref, atol=2e-1, rtol=2e-1)

    print("KERNEL_OK")
</pallas_src>

<mosaic_0001>
module attributes {stable_mosaic.version = 11 : i64} {
  func.func @_bottleneck_kernel(%arg0: memref<8x32xf32, #tpu.memory_space<vmem>>, %arg1: memref<32x256xf32, #tpu.memory_space<vmem>>, %arg2: memref<1x256xf32, #tpu.memory_space<vmem>>, %arg3: memref<1x256xf32, #tpu.memory_space<vmem>>, %arg4: memref<1x256xf32, #tpu.memory_space<vmem>>, %arg5: memref<256x256xf32, #tpu.memory_space<vmem>>, %arg6: memref<1x256xf32, #tpu.memory_space<vmem>>, %arg7: memref<1x256xf32, #tpu.memory_space<vmem>>, %arg8: memref<1x256xf32, #tpu.memory_space<vmem>>, %arg9: memref<8x256xf32, #tpu.memory_space<vmem>>) attributes {dimension_semantics = [], scalar_prefetch = 0 : i64, scratch_operands = 0 : i64, tpu.core_type = #tpu.core_type<tc>} {
    %c0 = arith.constant 0 : index
    %c0_0 = arith.constant 0 : index
    %0 = vector.load %arg0[%c0, %c0_0] : memref<8x32xf32, #tpu.memory_space<vmem>>, vector<8x32xf32>
    %c0_1 = arith.constant 0 : index
    %c0_2 = arith.constant 0 : index
    %1 = vector.load %arg1[%c0_1, %c0_2] : memref<32x256xf32, #tpu.memory_space<vmem>>, vector<32x256xf32>
    %cst = arith.constant dense<0.000000e+00> : vector<8x256xf32>
    %2 = tpu.matmul %0, %1, %cst {dimension_numbers = #tpu.dot_dimension_numbers<[1], [0], [0], [1], [0, 0, 1, 1], [], []>} : vector<8x32xf32>, vector<32x256xf32>, vector<8x256xf32> -> vector<8x256xf32>
    %c0_3 = arith.constant 0 : index
    %c0_4 = arith.constant 0 : index
    %3 = vector.load %arg2[%c0_3, %c0_4] : memref<1x256xf32, #tpu.memory_space<vmem>>, vector<1x256xf32>
    %4 = vector.broadcast %3 : vector<1x256xf32> to vector<8x256xf32>
    %5 = arith.addf %2, %4 : vector<8x256xf32>
    %cst_5 = arith.constant dense<0.000000e+00> : vector<256xf32>
    %6 = vector.multi_reduction <add>, %5, %cst_5 [0] : vector<8x256xf32> to vector<256xf32>
    %7 = vector.shape_cast %6 : vector<256xf32> to vector<1x256xf32>
    %cst_6 = arith.constant 8.000000e+00 : f32
    %8 = vector.broadcast %cst_6 : f32 to vector<1x256xf32>
    %9 = arith.divf %7, %8 : vector<1x256xf32>
    %10 = vector.broadcast %9 : vector<1x256xf32> to vector<8x256xf32>
    %11 = arith.subf %5, %10 : vector<8x256xf32>
    %12 = vector.broadcast %9 : vector<1x256xf32> to vector<8x256xf32>
    %13 = arith.subf %5, %12 : vector<8x256xf32>
    %14 = arith.mulf %11, %13 : vector<8x256xf32>
    %cst_7 = arith.constant dense<0.000000e+00> : vector<256xf32>
    %15 = vector.multi_reduction <add>, %14, %cst_7 [0] : vector<8x256xf32> to vector<256xf32>
    %16 = vector.shape_cast %15 : vector<256xf32> to vector<1x256xf32>
    %cst_8 = arith.constant 8.000000e+00 : f32
    %17 = vector.broadcast %cst_8 : f32 to vector<1x256xf32>
    %18 = arith.divf %16, %17 : vector<1x256xf32>
    %c0_9 = arith.constant 0 : index
    %c0_10 = arith.constant 0 : index
    %19 = vector.load %arg3[%c0_9, %c0_10] : memref<1x256xf32, #tpu.memory_space<vmem>>, vector<1x256xf32>
    %cst_11 = arith.constant 9.99999974E-6 : f32
    %20 = vector.broadcast %cst_11 : f32 to vector<1x256xf32>
    %21 = arith.addf %18, %20 : vector<1x256xf32>
    %22 = math.rsqrt %21 : vector<1x256xf32>
    %23 = arith.mulf %19, %22 : vector<1x256xf32>
    %c0_12 = arith.constant 0 : index
    %c0_13 = arith.constant 0 : index
    %24 = vector.load %arg4[%c0_12, %c0_13] : memref<1x256xf32, #tpu.memory_space<vmem>>, vector<1x256xf32>
    %25 = arith.mulf %9, %23 : vector<1x256xf32>
    %26 = arith.subf %24, %25 : vector<1x256xf32>
    %27 = vector.broadcast %23 : vector<1x256xf32> to vector<8x256xf32>
    %28 = arith.mulf %5, %27 : vector<8x256xf32>
    %29 = vector.broadcast %26 : vector<1x256xf32> to vector<8x256xf32>
    %30 = arith.addf %28, %29 : vector<8x256xf32>
    %cst_14 = arith.constant 0.000000e+00 : f32
    %31 = vector.broadcast %cst_14 : f32 to vector<8x256xf32>
    %32 = arith.maximumf %30, %31 : vector<8x256xf32>
    %c0_15 = arith.constant 0 : index
    %c0_16 = arith.constant 0 : index
    %33 = vector.load %arg5[%c0_15, %c0_16] : memref<256x256xf32, #tpu.memory_space<vmem>>, vector<256x256xf32>
    %cst_17 = arith.constant dense<0.000000e+00> : vector<8x256xf32>
    %34 = tpu.matmul %32, %33, %cst_17 {dimension_numbers = #tpu.dot_dimension_numbers<[1], [0], [0], [1], [0, 0, 1, 1], [], []>} : vector<8x256xf32>, vector<256x256xf32>, vector<8x256xf32> -> vector<8x256xf32>
    %c0_18 = arith.constant 0 : index
    %c0_19 = arith.constant 0 : index
    %35 = vector.load %arg6[%c0_18, %c0_19] : memref<1x256xf32, #tpu.memory_space<vmem>>, vector<1x256xf32>
    %36 = vector.broadcast %35 : vector<1x256xf32> to vector<8x256xf32>
    %37 = arith.addf %34, %36 : vector<8x256xf32>
    %cst_20 = arith.constant dense<0.000000e+00> : vector<256xf32>
    %38 = vector.multi_reduction <add>, %37, %cst_20 [0] : vector<8x256xf32> to vector<256xf32>
    %39 = vector.shape_cast %38 : vector<256xf32> to vector<1x256xf32>
    %cst_21 = arith.constant 8.000000e+00 : f32
    %40 = vector.broadcast %cst_21 : f32 to vector<1x256xf32>
    %41 = arith.divf %39, %40 : vector<1x256xf32>
    %42 = vector.broadcast %41 : vector<1x256xf32> to vector<8x256xf32>
    %43 = arith.subf %37, %42 : vector<8x256xf32>
    %44 = vector.broadcast %41 : vector<1x256xf32> to vector<8x256xf32>
    %45 = arith.subf %37, %44 : vector<8x256xf32>
    %46 = arith.mulf %43, %45 : vector<8x256xf32>
    %cst_22 = arith.constant dense<0.000000e+00> : vector<256xf32>
    %47 = vector.multi_reduction <add>, %46, %cst_22 [0] : vector<8x256xf32> to vector<256xf32>
    %48 = vector.shape_cast %47 : vector<256xf32> to vector<1x256xf32>
    %cst_23 = arith.constant 8.000000e+00 : f32
    %49 = vector.broadcast %cst_23 : f32 to vector<1x256xf32>
    %50 = arith.divf %48, %49 : vector<1x256xf32>
    %c0_24 = arith.constant 0 : index
    %c0_25 = arith.constant 0 : index
    %51 = vector.load %arg7[%c0_24, %c0_25] : memref<1x256xf32, #tpu.memory_space<vmem>>, vector<1x256xf32>
    %cst_26 = arith.constant 9.99999974E-6 : f32
    %52 = vector.broadcast %cst_26 : f32 to vector<1x256xf32>
    %53 = arith.addf %50, %52 : vector<1x256xf32>
    %54 = math.rsqrt %53 : vector<1x256xf32>
    %55 = arith.mulf %51, %54 : vector<1x256xf32>
    %c0_27 = arith.constant 0 : index
    %c0_28 = arith.constant 0 : index
    %56 = vector.load %arg8[%c0_27, %c0_28] : memref<1x256xf32, #tpu.memory_space<vmem>>, vector<1x256xf32>
    %57 = arith.mulf %41, %55 : vector<1x256xf32>
    %58 = arith.subf %56, %57 : vector<1x256xf32>
    %59 = vector.broadcast %55 : vector<1x256xf32> to vector<8x256xf32>
    %60 = arith.mulf %37, %59 : vector<8x256xf32>
    %61 = vector.broadcast %58 : vector<1x256xf32> to vector<8x256xf32>
    %62 = arith.addf %60, %61 : vector<8x256xf32>
    %cst_29 = arith.constant 0.000000e+00 : f32
    %63 = vector.broadcast %cst_29 : f32 to vector<8x256xf32>
    %64 = arith.maximumf %62, %63 : vector<8x256xf32>
    %c0_30 = arith.constant 0 : index
    %c0_31 = arith.constant 0 : index
    %65 = vector.load %arg9[%c0_30, %c0_31] : memref<8x256xf32, #tpu.memory_space<vmem>>, vector<8x256xf32>
    tpu.vector_store %arg9[%c0_30, %c0_31], %64 {strides = array<i32>} : memref<8x256xf32, #tpu.memory_space<vmem>>, vector<8x256xf32>,
    return
  }
}

</mosaic_0001>

<llo_original>
// kernel: tpu_custom_call.1
$region0: #{tpu_custom_call.1}
  #allocation0 [shape = 'u32[]', space=smem, size = 0x4, offset = 0x4, fixed_abs, tag = 'smem constant byte address 0x4 - core index']
  #allocation1 [shape = 'u32[144,128]{1,0:T(1,128)}', space=vmem, size = 0x12000, scoped, tag = 'internal scratch']
  %s0 = inlined_call_operand.hbm [shape: f32[8,32], index: 0, kind: input, shape index: {}]
  %s1 = inlined_call_operand.hbm [shape: f32[32,256], index: 1, kind: input, shape index: {}]
  %s2 = inlined_call_operand.vmem [shape: f32[1,256], index: 2, kind: input, shape index: {}]
  %s3 = inlined_call_operand.vmem [shape: f32[1,256], index: 3, kind: input, shape index: {}]
  %s4 = inlined_call_operand.vmem [shape: f32[1,256], index: 4, kind: input, shape index: {}]
  %s5 = inlined_call_operand.hbm [shape: f32[256,256], index: 5, kind: input, shape index: {}]
  %s6 = inlined_call_operand.vmem [shape: f32[1,256], index: 6, kind: input, shape index: {}]
  %s7 = inlined_call_operand.vmem [shape: f32[1,256], index: 7, kind: input, shape index: {}]
  %s8 = inlined_call_operand.vmem [shape: f32[1,256], index: 8, kind: input, shape index: {}]
  %s9 = inlined_call_operand.hbm [shape: f32[8,256], index: 9, kind: output, shape index: {}]
  %s10 = sld [smem:[#allocation0]]
  $region58: #{tpu_custom_call.1} parent=0
    _
  %s12 = ssub.s32 1, %s10
  %s13 = scalar_select 0, %s12, %s10
  $region1: #{tpu_custom_call.1} parent=0
    #allocation2 [shape = 'u8[4096]{0}', space=vmem, size = 0x1000, scoped, tag = 'input window, operand 0, single buffered']
    #allocation3 [shape = 's32[1]{0}', space=sflag, size = 0x4, scoped, tag = 'scoped memory for tpu_custom_call.1']
    #allocation4 [shape = 's32[1]{0}', space=sflag, size = 0x4, scoped, tag = 'scoped memory for tpu_custom_call.1']
    #allocation5 [shape = 'u8[32768]{0}', space=vmem, size = 0x8000, scoped, tag = 'input window, operand 1, single buffered']
    #allocation6 [shape = 's32[1]{0}', space=sflag, size = 0x4, scoped, tag = 'scoped memory for tpu_custom_call.1']
    #allocation7 [shape = 'u8[262144]{0}', space=vmem, size = 0x40000, scoped, tag = 'input window, operand 5, single buffered']
    #allocation8 [shape = 'u8[8192]{0}', space=vmem, size = 0x2000, scoped, tag = 'output window, operand 0, single buffered']
    %14 = vsyncpa [#allocation3], 0
    %15 = vsyncpa [#allocation6], 0
    %16 = vsyncpa [#allocation4], 0
    // Predicated region
    $region2: #{tpu_custom_call.1} parent=1 // pred_check
      _
    $region3: #{tpu_custom_call.1} parent=1 // pred_check_branch
      %18 = sbr.rel (0) target = $region5
    $region4: #{tpu_custom_call.1} parent=1 // pred_region
      %s20 = ssub.s32 128, 128
      %21 = vsyncadd [#allocation3], %s20
      %s23 = sshll.u32 [#allocation2], 4
      %s24 = int_to_ptr.vmem [resolvable:$true] %s23
      %26 = dma.hbm_to_vmem [thread:$0]  %s0, 128, %s24, [#allocation3]
    $region5: #{tpu_custom_call.1} parent=1 // pred_fallthru
      _
    // Predicated region
    $region6: #{tpu_custom_call.1} parent=1 // pred_check
      _
    $region7: #{tpu_custom_call.1} parent=1 // pred_check_branch
      %28 = sbr.rel (0) target = $region9
    $region8: #{tpu_custom_call.1} parent=1 // pred_region
      %s30 = ssub.s32 1024, 1024
      %31 = vsyncadd [#allocation6], %s30
      %s32 = sshll.u32 [#allocation5], 4
      %s33 = int_to_ptr.vmem [resolvable:$true] %s32
      %38 = dma.hbm_to_vmem [thread:$0]  %s1, 1024, %s33, [#allocation6], 256, 256, 16
    $region9: #{tpu_custom_call.1} parent=1 // pred_fallthru
      _
    // Predicated region
    $region10: #{tpu_custom_call.1} parent=1 // pred_check
      _
    $region11: #{tpu_custom_call.1} parent=1 // pred_check_branch
      %40 = sbr.rel (0) target = $region13
    $region12: #{tpu_custom_call.1} parent=1 // pred_region
      _
    $region13: #{tpu_custom_call.1} parent=1 // pred_fallthru
      _
    // Predicated region
    $region14: #{tpu_custom_call.1} parent=1 // pred_check
      _
    $region15: #{tpu_custom_call.1} parent=1 // pred_check_branch
      %42 = sbr.rel (0) target = $region17
    $region16: #{tpu_custom_call.1} parent=1 // pred_region
      _
    $region17: #{tpu_custom_call.1} parent=1 // pred_fallthru
      _
    // Predicated region
    $region18: #{tpu_custom_call.1} parent=1 // pred_check
      _
    $region19: #{tpu_custom_call.1} parent=1 // pred_check_branch
      %44 = sbr.rel (0) target = $region21
    $region20: #{tpu_custom_call.1} parent=1 // pred_region
      _
    $region21: #{tpu_custom_call.1} parent=1 // pred_fallthru
      _
    // Predicated region
    $region22: #{tpu_custom_call.1} parent=1 // pred_check
      _
    $region23: #{tpu_custom_call.1} parent=1 // pred_check_branch
      %46 = sbr.rel (0) target = $region25
    $region24: #{tpu_custom_call.1} parent=1 // pred_region
      %s48 = ssub.s32 8192, 8192
      %49 = vsyncadd [#allocation6], %s48
      %s50 = sshll.u32 [#allocation7], 4
      %s51 = int_to_ptr.vmem [resolvable:$true] %s50
      %56 = dma.hbm_to_vmem [thread:$0]  %s5, 8192, %s51, [#allocation6], 256, 256, 16
    $region25: #{tpu_custom_call.1} parent=1 // pred_fallthru
      _
    // Predicated region
    $region26: #{tpu_custom_call.1} parent=1 // pred_check
      _
    $region27: #{tpu_custom_call.1} parent=1 // pred_check_branch
      %58 = sbr.rel (0) target = $region29
    $region28: #{tpu_custom_call.1} parent=1 // pred_region
      _
    $region29: #{tpu_custom_call.1} parent=1 // pred_fallthru
      _
    // Predicated region
    $region30: #{tpu_custom_call.1} parent=1 // pred_check
      _
    $region31: #{tpu_custom_call.1} parent=1 // pred_check_branch
      %60 = sbr.rel (0) target = $region33
    $region32: #{tpu_custom_call.1} parent=1 // pred_region
      _
    $region33: #{tpu_custom_call.1} parent=1 // pred_fallthru
      _
    // Predicated region
    $region34: #{tpu_custom_call.1} parent=1 // pred_check
      _
    $region35: #{tpu_custom_call.1} parent=1 // pred_check_branch
      %62 = sbr.rel (0) target = $region37
    $region36: #{tpu_custom_call.1} parent=1 // pred_region
      _
    $region37: #{tpu_custom_call.1} parent=1 // pred_fallthru
      _
    // Predicated region
    $region38: #{tpu_custom_call.1} parent=1 // pred_check
      _
    $region39: #{tpu_custom_call.1} parent=1 // pred_check_branch
      %64 = sbr.rel (0) target = $region41
    $region40: #{tpu_custom_call.1} parent=1 // pred_region
      %65 = dma.done [#allocation3], 128
    $region41: #{tpu_custom_call.1} parent=1 // pred_fallthru
      _
    // Predicated region
    $region42: #{tpu_custom_call.1} parent=1 // pred_check
      _
    $region43: #{tpu_custom_call.1} parent=1 // pred_check_branch
      %67 = sbr.rel (0) target = $region45
    $region44: #{tpu_custom_call.1} parent=1 // pred_region
      %68 = dma.done [#allocation6], 1024
    $region45: #{tpu_custom_call.1} parent=1 // pred_fallthru
      _
    // Predicated region
    $region46: #{tpu_custom_call.1} parent=1 // pred_check
      _
    $region47: #{tpu_custom_call.1} parent=1 // pred_check_branch
      %70 = sbr.rel (0) target = $region49
    $region48: #{tpu_custom_call.1} parent=1 // pred_region
      %71 = dma.done [#allocation6], 8192
    $region49: #{tpu_custom_call.1} parent=1 // pred_fallthru
      _
    %v72 = vld [vmem:[#allocation2] sm:$0xff]
    %v73 = vld [vmem:[#allocation5] sm:$0xff]
    %v74 = vld [vmem:[#allocation5 + $0x8] sm:$0xff]
    %v75 = vld [vmem:[#allocation5 + $0x10] sm:$0xff]
    %v76 = vld [vmem:[#allocation5 + $0x18] sm:$0xff]
    %v77 = vld [vmem:[#allocation5 + $0x20] sm:$0xff]
    %v78 = vld [vmem:[#allocation5 + $0x28] sm:$0xff]
    %v79 = vld [vmem:[#allocation5 + $0x30] sm:$0xff]
    %v80 = vld [vmem:[#allocation5 + $0x38] sm:$0xff]
    %v81 = vld [vmem:[%s2] sm:$0x3]
    %v83 = vlaneseq
    %v84 = vshrl.u32 %v83, 7
    %v85 = vsub.s32 0, %v84
    %v86 = vrot.slane %v81, %v85
    %v87 = vlaneseq
    %v88 = vshrl.u32 %v87, 7
    %v89 = vsub.s32 1, %v88
    %v90 = vrot.slane %v81, %v89
    %vm93 = vcmask 261120
    %v95 = vsel %vm93, %v72, 0
    %97 = vmatprep.subr.mxu0 %v74
    %98 = vmatpush1.msra.mxu0 %v73
    %99 = vmatprep.subr.mxu0 %v76
    %100 = vmatpush1.msra.mxu0 %v75
    %101 = vmatprep.subr.mxu0 %v78
    %102 = vmatpush1.msra.mxu0 %v77
    %103 = vmatprep.subr.mxu0 %v80
    %104 = vmatpush1.msra.mxu0 %v79
    %105 = vmatprep.subr.mxu0 0.0
    %106 = vmatpush1.msra.mxu0 0.0
    %107 = vmatprep.subr.mxu0 0.0
    %108 = vmatpush1.msra.mxu0 0.0
    %109 = vmatprep.subr.mxu0 0.0
    %110 = vmatpush1.msra.mxu0 0.0
    %111 = vmatprep.subr.mxu0 0.0
    %112 = vmatpush1.msra.mxu0 0.0
    %113 = vmatprep.subr.mxu0 0.0
    %114 = vmatpush1.msra.mxu0 0.0
    %115 = vmatprep.subr.mxu0 0.0
    %116 = vmatpush1.msra.mxu0 0.0
    %117 = vmatprep.subr.mxu0 0.0
    %118 = vmatpush1.msra.mxu0 0.0
    %119 = vmatprep.subr.mxu0 0.0
    %120 = vmatpush1.msra.mxu0 0.0
    %121 = vmatprep.subr.mxu0 0.0
    %122 = vmatpush1.msra.mxu0 0.0
    %123 = vmatprep.subr.mxu0 0.0
    %124 = vmatpush1.msra.mxu0 0.0
    %125 = vmatprep.subr.mxu0 0.0
    %126 = vmatpush1.msra.mxu0 0.0
    %127 = vmatprep.subr.mxu0 0.0
    %128 = vmatpush1.msra.mxu0 0.0
    %129 = vmatprep.subr.mxu0 0.0
    %130 = vmatpush1.msra.mxu0 0.0
    %131 = vmatprep.subr.mxu0 0.0
    %132 = vmatpush1.msra.mxu0 0.0
    %133 = vmatprep.subr.mxu0 0.0
    %134 = vmatpush1.msra.mxu0 0.0
    %135 = vmatprep.subr.mxu0 0.0
    %136 = vmatpush1.msra.mxu0 0.0
    %137 = vmatprep.subr.mxu0 0.0
    %138 = vmatpush1.msra.mxu0 0.0
    %139 = vmatprep.subr.mxu0 0.0
    %140 = vmatpush1.msra.mxu0 0.0
    %141 = vmatprep.subr.mxu0 0.0
    %142 = vmatpush1.msra.mxu0 0.0
    %143 = vmatprep.subr.mxu0 0.0
    %144 = vmatpush1.msra.mxu0 0.0
    %145 = vmatprep.subr.mxu0 0.0
    %146 = vmatpush1.msra.mxu0 0.0
    %147 = vmatprep.subr.mxu0 0.0
    %148 = vmatpush1.msra.mxu0 0.0
    %149 = vmatprep.subr.mxu0 0.0
    %150 = vmatpush1.msra.mxu0 0.0
    %151 = vmatprep.subr.mxu0 0.0
    %152 = vmatpush1.msra.mxu0 0.0
    %153 = vmatprep.subr.mxu0 0.0
    %154 = vmatpush1.msra.mxu0 0.0
    %155 = vmatprep.subr.mxu0 0.0
    %156 = vmatpush1.msra.mxu0 0.0
    %157 = vmatprep.subr.mxu0 0.0
    %158 = vmatpush1.msra.mxu0 0.0
    %159 = vmatprep.subr.mxu0 0.0
    %160 = vmatpush1.msra.mxu0 0.0
    %161 = vmatprep.mubr.f32.mxu0 0.0
    %162 = vmatmul.mubr.f32.gmra.mrb[0].mxu0 %v95
    %v163 = vpop.f32.mrb[0].mxu0
    %v164 = vadd.f32 %v86, %v163
    %v165 = vpop.f32.mrb[0].mxu0
    %v166 = vadd.f32 %v90, %v165
    %167 = vdwg.mxu0
    %v168 = vrot.slane %v164, 4
    %v169 = vadd.f32 %v164, %v168
    %v170 = vrot.slane %v169, 2
    %v171 = vadd.f32 %v169, %v170
    %v172 = vrot.slane %v171, 1
    %v173 = vadd.f32 %v171, %v172
    %v174 = vrot.slane %v166, 4
    %v175 = vadd.f32 %v166, %v174
    %v176 = vrot.slane %v175, 2
    %v177 = vadd.f32 %v175, %v176
    %v178 = vrot.slane %v177, 1
    %v179 = vadd.f32 %v177, %v178
    %v180 = vrcp.pop 8.0
    %v181 = vmul.f32 %v173, %v180
    %v182 = vmul.f32 %v179, %v180
    %v183 = vsub.f32 %v164, %v181
    %v184 = vsub.f32 %v166, %v182
    %v185 = vmul.f32 %v183, %v183
    %v186 = vmul.f32 %v184, %v184
    %v187 = vrot.slane %v185, 4
    %v188 = vadd.f32 %v185, %v187
    %v189 = vrot.slane %v188, 2
    %v190 = vadd.f32 %v188, %v189
    %v191 = vrot.slane %v190, 1
    %v192 = vadd.f32 %v190, %v191
    %v193 = vrot.slane %v186, 4
    %v194 = vadd.f32 %v186, %v193
    %v195 = vrot.slane %v194, 2
    %v196 = vadd.f32 %v194, %v195
    %v197 = vrot.slane %v196, 1
    %v198 = vadd.f32 %v196, %v197
    %v199 = vmul.f32 %v192, %v180
    %v200 = vmul.f32 %v198, %v180
    %v201 = vld [vmem:[%s3] sm:$0x3]
    %v202 = vadd.f32 %v199, 1e-05
    %v203 = vadd.f32 %v200, 1e-05
    %v204 = vrsqrt.pop %v202
    %v205 = vrsqrt.pop %v203
    %v208 = vcombine.low %v204, %v205
    %v210 = vunpack.c.l.s4 1966171168
    %v211 = vunpack.c.0.s8 %v210
    %v212 = vlaneseq
    %v213 = vshrl.u32 %v212, 7
    %v214 = vsub.s32 %v211, %v213
    %v215 = vrot.slane %v208, %v214
    %v217 = vunpack.c.l.s4 1966171168
    %v218 = vunpack.c.0.s8 %v217
    %v219 = vlaneseq
    %v220 = vshrl.u32 %v219, 7
    %v221 = vsub.s32 %v218, %v220
    %v222 = vrot.slane %v215, %v221
    %v224 = vmul.f32 %v201, %v222
    %v225 = vld [vmem:[%s4] sm:$0x3]
    %v227 = vlaneseq
    %v228 = vshrl.u32 %v227, 7
    %v229 = vsub.s32 0, %v228
    %v230 = vrot.slane %v224, %v229
    %v231 = vlaneseq
    %v232 = vshrl.u32 %v231, 7
    %v233 = vsub.s32 1, %v232
    %v234 = vrot.slane %v224, %v233
    %v237 = vmul.f32 %v181, %v230
    %v238 = vmul.f32 %v182, %v234
    %v241 = vcombine.low %v237, %v238
    %v243 = vunpack.c.l.s4 1966171168
    %v244 = vunpack.c.0.s8 %v243
    %v245 = vlaneseq
    %v246 = vshrl.u32 %v245, 7
    %v247 = vsub.s32 %v244, %v246
    %v248 = vrot.slane %v241, %v247
    %v250 = vunpack.c.l.s4 1966171168
    %v251 = vunpack.c.0.s8 %v250
    %v252 = vlaneseq
    %v253 = vshrl.u32 %v252, 7
    %v254 = vsub.s32 %v251, %v253
    %v255 = vrot.slane %v248, %v254
    %v257 = vsub.f32 %v225, %v255
    %v258 = vmul.f32 %v164, %v230
    %v259 = vmul.f32 %v166, %v234
    %v261 = vlaneseq
    %v262 = vshrl.u32 %v261, 7
    %v263 = vsub.s32 0, %v262
    %v264 = vrot.slane %v257, %v263
    %v265 = vlaneseq
    %v266 = vshrl.u32 %v265, 7
    %v267 = vsub.s32 1, %v266
    %v268 = vrot.slane %v257, %v267
    %v271 = vadd.f32 %v258, %v264
    %v272 = vadd.f32 %v259, %v268
    %v273 = vmax.f32 %v271, 0.0
    %v274 = vmax.f32 %v272, 0.0
    %v275 = vld [vmem:[#allocation7] sm:$0xff]
    %v276 = vld [vmem:[#allocation7 + $0x8] sm:$0xff]
    %v277 = vld [vmem:[#allocation7 + $0x10] sm:$0xff]
    %v278 = vld [vmem:[#allocation7 + $0x18] sm:$0xff]
    %v279 = vld [vmem:[#allocation7 + $0x20] sm:$0xff]
    %v280 = vld [vmem:[#allocation7 + $0x28] sm:$0xff]
    %v281 = vld [vmem:[#allocation7 + $0x30] sm:$0xff]
    %v282 = vld [vmem:[#allocation7 + $0x38] sm:$0xff]
    %v283 = vld [vmem:[#allocation7 + $0x40] sm:$0xff]
    %v284 = vld [vmem:[#allocation7 + $0x48] sm:$0xff]
    %v285 = vld [vmem:[#allocation7 + $0x50] sm:$0xff]
    %v286 = vld [vmem:[#allocation7 + $0x58] sm:$0xff]
    %v287 = vld [vmem:[#allocation7 + $0x60] sm:$0xff]
    %v288 = vld [vmem:[#allocation7 + $0x68] sm:$0xff]
    %v289 = vld [vmem:[#allocation7 + $0x70] sm:$0xff]
    %v290 = vld [vmem:[#allocation7 + $0x78] sm:$0xff]
    %v291 = vld [vmem:[#allocation7 + $0x80] sm:$0xff]
    %v292 = vld [vmem:[#allocation7 + $0x88] sm:$0xff]
    %v293 = vld [vmem:[#allocation7 + $0x90] sm:$0xff]
    %v294 = vld [vmem:[#allocation7 + $0x98] sm:$0xff]
    %v295 = vld [vmem:[#allocation7 + $0xa0] sm:$0xff]
    %v296 = vld [vmem:[#allocation7 + $0xa8] sm:$0xff]
    %v297 = vld [vmem:[#allocation7 + $0xb0] sm:$0xff]
    %v298 = vld [vmem:[#allocation7 + $0xb8] sm:$0xff]
    %v299 = vld [vmem:[#allocation7 + $0xc0] sm:$0xff]
    %v300 = vld [vmem:[#allocation7 + $0xc8] sm:$0xff]
    %v301 = vld [vmem:[#allocation7 + $0xd0] sm:$0xff]
    %v302 = vld [vmem:[#allocation7 + $0xd8] sm:$0xff]
    %v303 = vld [vmem:[#allocation7 + $0xe0] sm:$0xff]
    %v304 = vld [vmem:[#allocation7 + $0xe8] sm:$0xff]
    %v305 = vld [vmem:[#allocation7 + $0xf0] sm:$0xff]
    %v306 = vld [vmem:[#allocation7 + $0xf8] sm:$0xff]
    %v307 = vld [vmem:[#allocation7 + $0x100] sm:$0xff]
    %v308 = vld [vmem:[#allocation7 + $0x108] sm:$0xff]
    %v309 = vld [vmem:[#allocation7 + $0x110] sm:$0xff]
    %v310 = vld [vmem:[#allocation7 + $0x118] sm:$0xff]
    %v311 = vld [vmem:[#allocation7 + $0x120] sm:$0xff]
    %v312 = vld [vmem:[#allocation7 + $0x128] sm:$0xff]
    %v313 = vld [vmem:[#allocation7 + $0x130] sm:$0xff]
    %v314 = vld [vmem:[#allocation7 + $0x138] sm:$0xff]
    %v315 = vld [vmem:[#allocation7 + $0x140] sm:$0xff]
    %v316 = vld [vmem:[#allocation7 + $0x148] sm:$0xff]
    %v317 = vld [vmem:[#allocation7 + $0x150] sm:$0xff]
    %v318 = vld [vmem:[#allocation7 + $0x158] sm:$0xff]
    %v319 = vld [vmem:[#allocation7 + $0x160] sm:$0xff]
    %v320 = vld [vmem:[#allocation7 + $0x168] sm:$0xff]
    %v321 = vld [vmem:[#allocation7 + $0x170] sm:$0xff]
    %v322 = vld [vmem:[#allocation7 + $0x178] sm:$0xff]
    %v323 = vld [vmem:[#allocation7 + $0x180] sm:$0xff]
    %v324 = vld [vmem:[#allocation7 + $0x188] sm:$0xff]
    %v325 = vld [vmem:[#allocation7 + $0x190] sm:$0xff]
    %v326 = vld [vmem:[#allocation7 + $0x198] sm:$0xff]
    %v327 = vld [vmem:[#allocation7 + $0x1a0] sm:$0xff]
    %v328 = vld [vmem:[#allocation7 + $0x1a8] sm:$0xff]
    %v329 = vld [vmem:[#allocation7 + $0x1b0] sm:$0xff]
    %v330 = vld [vmem:[#allocation7 + $0x1b8] sm:$0xff]
    %v331 = vld [vmem:[#allocation7 + $0x1c0] sm:$0xff]
    %v332 = vld [vmem:[#allocation7 + $0x1c8] sm:$0xff]
    %v333 = vld [vmem:[#allocation7 + $0x1d0] sm:$0xff]
    %v334 = vld [vmem:[#allocation7 + $0x1d8] sm:$0xff]
    %v335 = vld [vmem:[#allocation7 + $0x1e0] sm:$0xff]
    %v336 = vld [vmem:[#allocation7 + $0x1e8] sm:$0xff]
    %v337 = vld [vmem:[#allocation7 + $0x1f0] sm:$0xff]
    %v338 = vld [vmem:[#allocation7 + $0x1f8] sm:$0xff]
    %v339 = vld [vmem:[%s6] sm:$0x3]
    %v341 = vlaneseq
    %v342 = vshrl.u32 %v341, 7
    %v343 = vsub.s32 0, %v342
    %v344 = vrot.slane %v339, %v343
    %v345 = vlaneseq
    %v346 = vshrl.u32 %v345, 7
    %v347 = vsub.s32 1, %v346
    %v348 = vrot.slane %v339, %v347
    %351 = vmatprep.subr.mxu0 %v276
    %352 = vmatpush1.msra.mxu0 %v275
    %353 = vmatprep.subr.mxu0 %v278
    %354 = vmatpush1.msra.mxu0 %v277
    %355 = vmatprep.subr.mxu0 %v280
    %356 = vmatpush1.msra.mxu0 %v279
    %357 = vmatprep.subr.mxu0 %v282
    %358 = vmatpush1.msra.mxu0 %v281
    %359 = vmatprep.subr.mxu0 %v284
    %360 = vmatpush1.msra.mxu0 %v283
    %361 = vmatprep.subr.mxu0 %v286
    %362 = vmatpush1.msra.mxu0 %v285
    %363 = vmatprep.subr.mxu0 %v288
    %364 = vmatpush1.msra.mxu0 %v287
    %365 = vmatprep.subr.mxu0 %v290
    %366 = vmatpush1.msra.mxu0 %v289
    %367 = vmatprep.subr.mxu0 %v292
    %368 = vmatpush1.msra.mxu0 %v291
    %369 = vmatprep.subr.mxu0 %v294
    %370 = vmatpush1.msra.mxu0 %v293
    %371 = vmatprep.subr.mxu0 %v296
    %372 = vmatpush1.msra.mxu0 %v295
    %373 = vmatprep.subr.mxu0 %v298
    %374 = vmatpush1.msra.mxu0 %v297
    %375 = vmatprep.subr.mxu0 %v300
    %376 = vmatpush1.msra.mxu0 %v299
    %377 = vmatprep.subr.mxu0 %v302
    %378 = vmatpush1.msra.mxu0 %v301
    %379 = vmatprep.subr.mxu0 %v304
    %380 = vmatpush1.msra.mxu0 %v303
    %381 = vmatprep.subr.mxu0 %v306
    %382 = vmatpush1.msra.mxu0 %v305
    %383 = vmatprep.subr.mxu0 %v308
    %384 = vmatpush1.msra.mxu0 %v307
    %385 = vmatprep.subr.mxu0 %v310
    %386 = vmatpush1.msra.mxu0 %v309
    %387 = vmatprep.subr.mxu0 %v312
    %388 = vmatpush1.msra.mxu0 %v311
    %389 = vmatprep.subr.mxu0 %v314
    %390 = vmatpush1.msra.mxu0 %v313
    %391 = vmatprep.subr.mxu0 %v316
    %392 = vmatpush1.msra.mxu0 %v315
    %393 = vmatprep.subr.mxu0 %v318
    %394 = vmatpush1.msra.mxu0 %v317
    %395 = vmatprep.subr.mxu0 %v320
    %396 = vmatpush1.msra.mxu0 %v319
    %397 = vmatprep.subr.mxu0 %v322
    %398 = vmatpush1.msra.mxu0 %v321
    %399 = vmatprep.subr.mxu0 %v324
    %400 = vmatpush1.msra.mxu0 %v323
    %401 = vmatprep.subr.mxu0 %v326
    %402 = vmatpush1.msra.mxu0 %v325
    %403 = vmatprep.subr.mxu0 %v328
    %404 = vmatpush1.msra.mxu0 %v327
    %405 = vmatprep.subr.mxu0 %v330
    %406 = vmatpush1.msra.mxu0 %v329
    %407 = vmatprep.subr.mxu0 %v332
    %408 = vmatpush1.msra.mxu0 %v331
    %409 = vmatprep.subr.mxu0 %v334
    %410 = vmatpush1.msra.mxu0 %v333
    %411 = vmatprep.subr.mxu0 %v336
    %412 = vmatpush1.msra.mxu0 %v335
    %413 = vmatprep.subr.mxu0 %v338
    %414 = vmatpush1.msra.mxu0 %v337
    %415 = vmatprep.mubr.f32.mxu0 %v274
    %416 = vmatmul.mubr.f32.gmra.mrb[0].mxu0 %v273
    %v417 = vpop.f32.mrb[0].mxu0
    %v418 = vadd.f32 %v344, %v417
    %v419 = vpop.f32.mrb[0].mxu0
    %v420 = vadd.f32 %v348, %v419
    %421 = vdwg.mxu0
    %v422 = vrot.slane %v418, 4
    %v423 = vadd.f32 %v418, %v422
    %v424 = vrot.slane %v423, 2
    %v425 = vadd.f32 %v423, %v424
    %v426 = vrot.slane %v425, 1
    %v427 = vadd.f32 %v425, %v426
    %v428 = vrot.slane %v420, 4
    %v429 = vadd.f32 %v420, %v428
    %v430 = vrot.slane %v429, 2
    %v431 = vadd.f32 %v429, %v430
    %v432 = vrot.slane %v431, 1
    %v433 = vadd.f32 %v431, %v432
    %v434 = vmul.f32 %v427, %v180
    %v435 = vmul.f32 %v433, %v180
    %v436 = vsub.f32 %v418, %v434
    %v437 = vsub.f32 %v420, %v435
    %v438 = vmul.f32 %v436, %v436
    %v439 = vmul.f32 %v437, %v437
    %v440 = vrot.slane %v438, 4
    %v441 = vadd.f32 %v438, %v440
    %v442 = vrot.slane %v441, 2
    %v443 = vadd.f32 %v441, %v442
    %v444 = vrot.slane %v443, 1
    %v445 = vadd.f32 %v443, %v444
    %v446 = vrot.slane %v439, 4
    %v447 = vadd.f32 %v439, %v446
    %v448 = vrot.slane %v447, 2
    %v449 = vadd.f32 %v447, %v448
    %v450 = vrot.slane %v449, 1
    %v451 = vadd.f32 %v449, %v450
    %v452 = vmul.f32 %v445, %v180
    %v453 = vmul.f32 %v451, %v180
    %v454 = vld [vmem:[%s7] sm:$0x3]
    %v455 = vadd.f32 %v452, 1e-05
    %v456 = vadd.f32 %v453, 1e-05
    %v457 = vrsqrt.pop %v455
    %v458 = vrsqrt.pop %v456
    %v461 = vcombine.low %v457, %v458
    %v463 = vunpack.c.l.s4 1966171168
    %v464 = vunpack.c.0.s8 %v463
    %v465 = vlaneseq
    %v466 = vshrl.u32 %v465, 7
    %v467 = vsub.s32 %v464, %v466
    %v468 = vrot.slane %v461, %v467
    %v470 = vunpack.c.l.s4 1966171168
    %v471 = vunpack.c.0.s8 %v470
    %v472 = vlaneseq
    %v473 = vshrl.u32 %v472, 7
    %v474 = vsub.s32 %v471, %v473
    %v475 = vrot.slane %v468, %v474
    %v477 = vmul.f32 %v454, %v475
    %v478 = vld [vmem:[%s8] sm:$0x3]
    %v480 = vlaneseq
    %v481 = vshrl.u32 %v480, 7
    %v482 = vsub.s32 0, %v481
    %v483 = vrot.slane %v477, %v482
    %v484 = vlaneseq
    %v485 = vshrl.u32 %v484, 7
    %v486 = vsub.s32 1, %v485
    %v487 = vrot.slane %v477, %v486
    %v490 = vmul.f32 %v434, %v483
    %v491 = vmul.f32 %v435, %v487
    %v494 = vcombine.low %v490, %v491
    %v496 = vunpack.c.l.s4 1966171168
    %v497 = vunpack.c.0.s8 %v496
    %v498 = vlaneseq
    %v499 = vshrl.u32 %v498, 7
    %v500 = vsub.s32 %v497, %v499
    %v501 = vrot.slane %v494, %v500
    %v503 = vunpack.c.l.s4 1966171168
    %v504 = vunpack.c.0.s8 %v503
    %v505 = vlaneseq
    %v506 = vshrl.u32 %v505, 7
    %v507 = vsub.s32 %v504, %v506
    %v508 = vrot.slane %v501, %v507
    %v510 = vsub.f32 %v478, %v508
    %v511 = vmul.f32 %v418, %v483
    %v512 = vmul.f32 %v420, %v487
    %v514 = vlaneseq
    %v515 = vshrl.u32 %v514, 7
    %v516 = vsub.s32 0, %v515
    %v517 = vrot.slane %v510, %v516
    %v518 = vlaneseq
    %v519 = vshrl.u32 %v518, 7
    %v520 = vsub.s32 1, %v519
    %v521 = vrot.slane %v510, %v520
    %v524 = vadd.f32 %v511, %v517
    %v525 = vadd.f32 %v512, %v521
    %v526 = vmax.f32 %v524, 0.0
    %v527 = vmax.f32 %v525, 0.0
    %528 = vst [vmem:[#allocation8] sm:$0xff] %v526
    %529 = vst [vmem:[#allocation8 + $0x8] sm:$0xff] %v527
    // Predicated region
    $region50: #{tpu_custom_call.1} parent=1 // pred_check
      _
    $region51: #{tpu_custom_call.1} parent=1 // pred_check_branch
      %531 = sbr.rel (0) target = $region53
    $region52: #{tpu_custom_call.1} parent=1 // pred_region
      %s533 = ssub.s32 256, 256
      %534 = vsyncadd [#allocation4], %s533
      %s536 = sshll.u32 [#allocation8], 4
      %s537 = int_to_ptr.vmem [resolvable:$true] %s536
      %539 = dma.vmem_to_hbm [thread:$0]  %s537, 256, %s9, [#allocation4]
    $region53: #{tpu_custom_call.1} parent=1 // pred_fallthru
      _
    // Predicated region
    $region54: #{tpu_custom_call.1} parent=1 // pred_check
      _
    $region55: #{tpu_custom_call.1} parent=1 // pred_check_branch
      %541 = sbr.rel (0) target = $region57
    $region56: #{tpu_custom_call.1} parent=1 // pred_region
      %542 = dma.done [#allocation4], 256
    $region57: #{tpu_custom_call.1} parent=1 // pred_fallthru
      _
    %543 = vsyncpa [#allocation3], 1
    %544 = vsyncpa [#allocation6], 1
    %545 = vsyncpa [#allocation4], 1

</llo_original>
